<compile_context>
chip_gen: v6e
topology: v6e:2x2x1
jax: 0.10.0
libtpu: 0.0.40
codegen_flags: <defaults>
</compile_context>

<pallas_src>
import functools
import math

import jax
import jax.numpy as jnp
from jax.experimental import pallas as pl
from jax.experimental.pallas import tpu as pltpu

_LANES = 128
_TARGET_BLOCK_BYTES = 2 * 1024 * 1024   # ~2 MiB blocks: fine on v5e/v6e/v7x


def _round_up(x: int, m: int) -> int:
    return ((x + m - 1) // m) * m


# ----------------------------------------------------------------------------
# Dropout kernel (the actual forward path: dropout(TokenEmbedding(x)) = dropout(x))
# ----------------------------------------------------------------------------
def _dropout_kernel(seed_ref, x_ref, o_ref, *, threshold: int, scale: float,
                    tile_rows: int):
    """Inverted dropout on one (tile_rows, d_model) native-dtype tile.

    Keep mask = fmix32(global_flat_index, seed) >= threshold, so the mask
    depends only on (seed, element position), never on the tiling choice.
    """
    i = pl.program_id(0)
    rows, cols = x_ref.shape

    row_l = jax.lax.broadcasted_iota(jnp.int32, (rows, cols), 0)
    col = jax.lax.broadcasted_iota(jnp.int32, (rows, cols), 1)
    row_g = row_l + i * tile_rows
    idx = (row_g * cols + col).astype(jnp.uint32)

    seed = seed_ref[0].astype(jnp.uint32)
    # murmur3-style 32-bit finalizer (counter-based, stateless, portable).
    h = idx * jnp.uint32(2654435761) + seed
    h = h ^ (h >> 16)
    h = h * jnp.uint32(0x85EBCA6B)
    h = h ^ (h >> 13)
    h = h * jnp.uint32(0xC2B2AE35)
    h = h ^ (h >> 16)

    keep = h >= jnp.uint32(threshold)          # P(drop) = threshold / 2^32 = rate
    xv = x_ref[...]
    scale_v = jnp.asarray(scale, dtype=xv.dtype)
    o_ref[...] = jnp.where(keep, xv * scale_v, jnp.zeros_like(xv))


def dropout(x: jax.Array, *, rate: float, seed: int) -> jax.Array:
    """Pallas inverted dropout (training mode); same shape/dtype as x."""
    if rate <= 0.0:
        return x
    if rate >= 1.0:
        return jnp.zeros_like(x)

    orig_shape = x.shape
    d_model = int(orig_shape[-1]) if x.ndim >= 2 else int(orig_shape[0])
    rows = int(x.size) // d_model
    x2 = x.reshape(rows, d_model)              # free, contiguous, native dtype

    itemsize = int(jnp.dtype(x.dtype).itemsize)
    # ~2 MiB blocks; row-dim tile a multiple of 8 (or the full dim).
    rows_per_block = max(8, (_TARGET_BLOCK_BYTES // max(1, d_model * itemsize)) // 8 * 8)
    tile_rows = rows if rows <= rows_per_block else rows_per_block
    grid = pl.cdiv(rows, tile_rows)            # partial last block masked by Pallas

    threshold = min(int(round(rate * (2.0 ** 32))), 2 ** 32 - 1)
    scale = 1.0 / (1.0 - rate)
    seed_arr = jnp.asarray([seed], dtype=jnp.int32)

    out2 = pl.pallas_call(
        functools.partial(_dropout_kernel, threshold=threshold, scale=scale,
                          tile_rows=tile_rows),
        out_shape=jax.ShapeDtypeStruct((rows, d_model), x.dtype),
        grid_spec=pltpu.PrefetchScalarGridSpec(
            num_scalar_prefetch=1,
            grid=(grid,),
            in_specs=[pl.BlockSpec((tile_rows, d_model), lambda i, s: (i, 0))],
            out_specs=pl.BlockSpec((tile_rows, d_model), lambda i, s: (i, 0)),
        ),
        compiler_params=pltpu.CompilerParams(dimension_semantics=("parallel",)),
    )(seed_arr, x2)

    return out2.reshape(orig_shape)


# ----------------------------------------------------------------------------
# Sinusoidal positional embedding (module's `pe` buffer; unused in forward)
# ----------------------------------------------------------------------------
def _pe_kernel(div_ref, phase_ref, o_ref, *, tile_seq: int):
    """One (tile_seq, d_pad) tile: pe = sin(pos * freq + phase)."""
    i = pl.program_id(0)
    pos = jax.lax.broadcasted_iota(jnp.float32, (tile_seq, 1), 0)
    pos = pos + (i * tile_seq).astype(jnp.float32)
    # Single transcendental per element: cos(x) == sin(x + pi/2);
    # freq/phase are precomputed (1, d_pad) rows -> no per-element exp.
    o_ref[...] = jnp.sin(pos * div_ref[...] + phase_ref[...])


def positional_embedding(seq_len: int, d_model: int) -> jax.Array:
    """Sinusoidal PE, shape (1, seq_len, d_model), float32.  One-time constant."""
    assert d_model % 2 == 0, "d_model must be even (same restriction as PyTorch)"
    d_pad = _round_up(d_model, _LANES)                 # lane-dense output

    half = jnp.arange(0, d_model, 2, dtype=jnp.float32)
    div_term = jnp.exp(half * jnp.float32(-math.log(10000.0) / d_model))
    div_full = jnp.repeat(div_term, 2)                 # frequency per column
    phase = jnp.where(jnp.arange(d_model) % 2 == 1,
                      jnp.float32(math.pi / 2.0), jnp.float32(0.0))
    div_row = jnp.pad(div_full, (0, d_pad - d_model)).reshape(1, d_pad)
    phase_row = jnp.pad(phase, (0, d_pad - d_model)).reshape(1, d_pad).astype(jnp.float32)

    seq8 = _round_up(max(seq_len, 1), 8)
    tile_seq = min(512, max(8, _round_up(-(-seq8 // 2), 8)))
    seq_pad = _round_up(seq8, tile_seq)

    pe = pl.pallas_call(
        functools.partial(_pe_kernel, tile_seq=tile_seq),
        out_shape=jax.ShapeDtypeStruct((seq_pad, d_pad), jnp.float32),
        grid=(seq_pad // tile_seq,),
        in_specs=[pl.BlockSpec((1, d_pad), lambda i: (0, 0)),
                  pl.BlockSpec((1, d_pad), lambda i: (0, 0))],
        out_specs=pl.BlockSpec((tile_seq, d_pad), lambda i: (i, 0)),
        compiler_params=pltpu.CompilerParams(dimension_semantics=("parallel",)),
    )(div_row, phase_row)
    return pe[:seq_len, :d_model][None]


# ----------------------------------------------------------------------------
# Module wrapper
# ----------------------------------------------------------------------------
class DataEmbeddingWoPosTemp:
    """JAX/Pallas port of DataEmbedding_wo_pos_temp (PatchTST spec).

    forward(x, x_mark) = Dropout(p)(TokenEmbedding(x)) = Dropout(p)(x);
    position_embedding exists as a cached constant buffer (built once by the
    Pallas PE kernel) but, exactly as in the PyTorch reference, is not used
    by forward.
    """

    def __init__(self, c_in, d_model, embed_type="fixed", freq="h",
                 dropout_rate=0.1, max_len=5000):
        self.c_in = c_in
        self.d_model = d_model
        self.dropout_rate = dropout_rate
        self.max_len = max_len
        self._pe = None   # built lazily, cached (constant buffer)
        # TODO(synk): temporal_embedding tables are never used by forward(); not ported.

    @property
    def pe(self):
        if self._pe is None:
            self._pe = positional_embedding(self.max_len, self.d_model)
        return self._pe

    def __call__(self, x, x_mark=None, *, training=True, seed=0):
        # value_embedding (TokenEmbedding) is identity in this spec.
        if not training or self.dropout_rate == 0.0:
            return x
        return dropout(x, rate=self.dropout_rate, seed=seed)


# ----------------------------------------------------------------------------
# References / self-test
# ----------------------------------------------------------------------------
def _reference_pe(seq_len: int, d_model: int) -> jnp.ndarray:
    position = jnp.arange(seq_len, dtype=jnp.float32)[:, None]
    div_term = jnp.exp(jnp.arange(0, d_model, 2, dtype=jnp.float32)
                       * -(math.log(10000.0) / d_model))
    pe = jnp.zeros((seq_len, d_model), jnp.float32)
    pe = pe.at[:, 0::2].set(jnp.sin(position * div_term))
    pe = pe.at[:, 1::2].set(jnp.cos(position * div_term))
    return pe[None]


if __name__ == "__main__":
    key = jax.random.PRNGKey(0)
    kx, km = jax.random.split(key)
    batch, seq_len, d_model = 2, 16, 32
    x = jax.random.normal(kx, (batch, seq_len, d_model), dtype=jnp.float32)
    x_mark = jax.random.randint(km, (batch, seq_len, 4), 0, 24, dtype=jnp.int32)

    emb = DataEmbeddingWoPosTemp(c_in=d_model, d_model=d_model,
                                 dropout_rate=0.1, max_len=64)

    # forward, training mode (dropout active — matches a fresh nn.Module)
    out = jax.block_until_ready(emb(x, x_mark, training=True, seed=1234))
    assert out.shape == x.shape and out.dtype == x.dtype
    scaled = x / (1.0 - emb.dropout_rate)
    is_zero = jnp.abs(out) < 1e-7
    is_scaled = jnp.abs(out - scaled) <= 1e-4 * (1.0 + jnp.abs(scaled))
    assert bool(jnp.all(jnp.logical_or(is_zero, is_scaled))), "dropout values wrong"
    keep_frac = float(jnp.mean(1.0 - is_zero.astype(jnp.float32)))
    assert 0.75 < keep_frac < 0.99, f"implausible keep fraction {keep_frac} for p=0.1"

    # forward, eval mode (dropout is identity)
    out_eval = jax.block_until_ready(emb(x, x_mark, training=False))
    assert jnp.array_equal(out_eval, x)

    # positional-embedding buffer (unused in forward) vs plain-JAX reference
    pe = jax.block_until_ready(emb.pe[:, :seq_len])
    assert pe.shape == (1, seq_len, d_model), pe.shape
    assert jnp.allclose(pe, _reference_pe(seq_len, d_model), atol=2e-5), "PE mismatch"

    print("KERNEL_OK")
</pallas_src>

<mosaic_0001>
module attributes {stable_mosaic.version = 11 : i64} {
  func.func @_dropout_kernel(%arg0: i32, %arg1: memref<1xi32, #tpu.memory_space<smem>>, %arg2: memref<32x32xf32, #tpu.memory_space<vmem>>, %arg3: memref<32x32xf32, #tpu.memory_space<vmem>>) attributes {dimension_semantics = [#tpu.dimension_semantics<parallel>], iteration_bounds = array<i64: 1>, scalar_prefetch = 1 : i64, scratch_operands = 0 : i64, tpu.core_type = #tpu.core_type<tc>, window_params = [{transform_indices = @transform_0, window_bounds = array<i64: 32, 32>}, {transform_indices = @transform_1, window_bounds = array<i64: 32, 32>}]} {
    %0 = tpu.iota {dimensions = array<i32: 0>} : vector<32x32xi32>
    %1 = tpu.iota {dimensions = array<i32: 1>} : vector<32x32xi32>
    %c32_i32 = arith.constant 32 : i32
    %2 = arith.muli %arg0, %c32_i32 : i32
    %3 = vector.broadcast %2 : i32 to vector<32x32xi32>
    %4 = arith.addi %0, %3 : vector<32x32xi32>
    %c32_i32_0 = arith.constant 32 : i32
    %5 = vector.broadcast %c32_i32_0 : i32 to vector<32x32xi32>
    %6 = arith.muli %4, %5 : vector<32x32xi32>
    %7 = arith.addi %6, %1 : vector<32x32xi32>
    %c0 = arith.constant 0 : index
    %8 = memref.load %arg1[%c0] : memref<1xi32, #tpu.memory_space<smem>>
    %c-1640531535_i32 = arith.constant -1640531535 : i32
    %9 = vector.broadcast %c-1640531535_i32 : i32 to vector<32x32xi32>
    %10 = arith.muli %7, %9 : vector<32x32xi32>
    %11 = vector.broadcast %8 : i32 to vector<32x32xi32>
    %12 = arith.addi %10, %11 : vector<32x32xi32>
    %c16_i32 = arith.constant 16 : i32
    %13 = vector.broadcast %c16_i32 : i32 to vector<32x32xi32>
    %14 = arith.shrui %12, %13 : vector<32x32xi32>
    %15 = arith.xori %12, %14 : vector<32x32xi32>
    %c-2048144789_i32 = arith.constant -2048144789 : i32
    %16 = vector.broadcast %c-2048144789_i32 : i32 to vector<32x32xi32>
    %17 = arith.muli %15, %16 : vector<32x32xi32>
    %c13_i32 = arith.constant 13 : i32
    %18 = vector.broadcast %c13_i32 : i32 to vector<32x32xi32>
    %19 = arith.shrui %17, %18 : vector<32x32xi32>
    %20 = arith.xori %17, %19 : vector<32x32xi32>
    %c-1028477387_i32 = arith.constant -1028477387 : i32
    %21 = vector.broadcast %c-1028477387_i32 : i32 to vector<32x32xi32>
    %22 = arith.muli %20, %21 : vector<32x32xi32>
    %c16_i32_1 = arith.constant 16 : i32
    %23 = vector.broadcast %c16_i32_1 : i32 to vector<32x32xi32>
    %24 = arith.shrui %22, %23 : vector<32x32xi32>
    %25 = arith.xori %22, %24 : vector<32x32xi32>
    %c429496730_i32 = arith.constant 429496730 : i32
    %26 = vector.broadcast %c429496730_i32 : i32 to vector<32x32xi32>
    %27 = arith.cmpi uge, %25, %26 : vector<32x32xi32>
    %c0_2 = arith.constant 0 : index
    %c0_3 = arith.constant 0 : index
    %28 = vector.load %arg2[%c0_2, %c0_3] : memref<32x32xf32, #tpu.memory_space<vmem>>, vector<32x32xf32>
    %cst = arith.constant 1.11111116 : f32
    %29 = vector.broadcast %cst : f32 to vector<32x32xf32>
    %30 = arith.mulf %28, %29 : vector<32x32xf32>
    %cst_4 = arith.constant 0.000000e+00 : f32
    %31 = vector.broadcast %cst_4 : f32 to vector<32x32xf32>
    %32 = arith.select %27, %30, %31 : vector<32x32xi1>, vector<32x32xf32>
    %c0_5 = arith.constant 0 : index
    %c0_6 = arith.constant 0 : index
    %33 = vector.load %arg3[%c0_5, %c0_6] : memref<32x32xf32, #tpu.memory_space<vmem>>, vector<32x32xf32>
    tpu.vector_store %arg3[%c0_5, %c0_6], %32 {strides = array<i32>} : memref<32x32xf32, #tpu.memory_space<vmem>>, vector<32x32xf32>,
    return
  }
  func.func @transform_0(%arg0: i32, %arg1: memref<1xi32, #tpu.memory_space<smem>>) -> (i32, i32) {
    %c0_i32 = arith.constant 0 : i32
    %c0_i32_0 = arith.constant 0 : i32
    return %arg0, %c0_i32 : i32, i32
  }
  func.func @transform_1(%arg0: i32, %arg1: memref<1xi32, #tpu.memory_space<smem>>) -> (i32, i32) {
    %c0_i32 = arith.constant 0 : i32
    %c0_i32_0 = arith.constant 0 : i32
    return %arg0, %c0_i32 : i32, i32
  }
}

</mosaic_0001>

<llo_original>
// kernel: tpu_custom_call.1
$region0: #{tpu_custom_call.1}
  #allocation0 [shape = 'u32[]', space=smem, size = 0x4, offset = 0x4, fixed_abs, tag = 'smem constant byte address 0x4 - core index']
  #allocation1 [shape = 'u32[144,128]{1,0:T(1,128)}', space=vmem, size = 0x12000, scoped, tag = 'internal scratch']
  #allocation2 [shape = 's32[1]{0}', space=sflag, size = 0x4, scoped, tag = 'scoped memory for tpu_custom_call.1']
  #allocation3 [shape = 's32[1]{0:T(128)S(6)}', space=smem, size = 0x200, scoped, tag = 'prefetched SMEM operand 0']
  %s0 = inlined_call_operand.<no memory space> [shape: s32[1], index: 0, kind: input, shape index: {}]
  %s1 = inlined_call_operand.hbm [shape: f32[32,32], index: 1, kind: input, shape index: {}]
  %s2 = inlined_call_operand.hbm [shape: f32[32,32], index: 2, kind: output, shape index: {}]
  %s3 = sld [smem:[#allocation0]]
  $region18: #{tpu_custom_call.1} parent=0
    _
  %s5 = ssub.s32 1, %s3
  %s6 = scalar_select 0, %s5, %s3
  %7 = sst [smem:[#allocation3]] %s0
  $region1: #{tpu_custom_call.1} parent=0
    #allocation4 [shape = 'u8[16384]{0}', space=vmem, size = 0x4000, scoped, tag = 'input window, operand 1, single buffered']
    #allocation5 [shape = 's32[1]{0}', space=sflag, size = 0x4, scoped, tag = 'scoped memory for tpu_custom_call.1']
    #allocation6 [shape = 's32[1]{0}', space=sflag, size = 0x4, scoped, tag = 'scoped memory for tpu_custom_call.1']
    #allocation7 [shape = 'u8[16384]{0}', space=vmem, size = 0x4000, scoped, tag = 'output window, operand 0, single buffered']
    %8 = vsyncpa [#allocation5], 0
    %9 = vsyncpa [#allocation6], 0
    // Predicated region
    $region2: #{tpu_custom_call.1} parent=1 // pred_check
      _
    $region3: #{tpu_custom_call.1} parent=1 // pred_check_branch
      %11 = sbr.rel (0) target = $region5
    $region4: #{tpu_custom_call.1} parent=1 // pred_region
      %s13 = ssub.s32 512, 512
      %14 = vsyncadd [#allocation5], %s13
      %s15 = sshll.u32 [#allocation4], 4
      %s16 = int_to_ptr.vmem [resolvable:$true] %s15
      %21 = dma.hbm_to_vmem [thread:$0]  %s1, 512, %s16, [#allocation5], 128, 128, 8
    $region5: #{tpu_custom_call.1} parent=1 // pred_fallthru
      _
    // Predicated region
    $region6: #{tpu_custom_call.1} parent=1 // pred_check
      _
    $region7: #{tpu_custom_call.1} parent=1 // pred_check_branch
      %23 = sbr.rel (0) target = $region9
    $region8: #{tpu_custom_call.1} parent=1 // pred_region
      %24 = dma.done [#allocation5], 512
    $region9: #{tpu_custom_call.1} parent=1 // pred_fallthru
      _
    %v25 = vlaneseq
    %v26 = vshrl.u32 %v25, 7
    %v27 = vadd.s32 %v26, 8
    %v28 = vadd.s32 %v26, 16
    %v29 = vadd.s32 %v26, 24
    %v30 = vlaneseq
    %v31 = vand.u32 %v30, 127
    %s32 = smul.u32 0, 32
    %v33 = vstv %s32
    %v34 = vadd.s32 %v26, %v33
    %v35 = vadd.s32 %v27, %v33
    %v36 = vadd.s32 %v28, %v33
    %v37 = vadd.s32 %v29, %v33
    %v38 = vmul.u32 %v34, 32
    %v39 = vmul.u32 %v35, 32
    %v40 = vmul.u32 %v36, 32
    %v41 = vmul.u32 %v37, 32
    %v42 = vadd.s32 %v38, %v31
    %v43 = vadd.s32 %v39, %v31
    %v44 = vadd.s32 %v40, %v31
    %v45 = vadd.s32 %v41, %v31
    %s46 = sld [smem:[#allocation3]]
    %v47 = vmul.u32 %v42, 2654435761
    %v48 = vmul.u32 %v43, 2654435761
    %v49 = vmul.u32 %v44, 2654435761
    %v50 = vmul.u32 %v45, 2654435761
    %v51 = vstv %s46
    %v52 = vadd.s32 %v47, %v51
    %v53 = vadd.s32 %v48, %v51
    %v54 = vadd.s32 %v49, %v51
    %v55 = vadd.s32 %v50, %v51
    %v56 = vshrl.u32 %v52, 16
    %v57 = vshrl.u32 %v53, 16
    %v58 = vshrl.u32 %v54, 16
    %v59 = vshrl.u32 %v55, 16
    %v60 = vxor.u32 %v52, %v56
    %v61 = vxor.u32 %v53, %v57
    %v62 = vxor.u32 %v54, %v58
    %v63 = vxor.u32 %v55, %v59
    %v64 = vmul.u32 %v60, 2246822507
    %v65 = vmul.u32 %v61, 2246822507
    %v66 = vmul.u32 %v62, 2246822507
    %v67 = vmul.u32 %v63, 2246822507
    %v68 = vshrl.u32 %v64, 13
    %v69 = vshrl.u32 %v65, 13
    %v70 = vshrl.u32 %v66, 13
    %v71 = vshrl.u32 %v67, 13
    %v72 = vxor.u32 %v64, %v68
    %v73 = vxor.u32 %v65, %v69
    %v74 = vxor.u32 %v66, %v70
    %v75 = vxor.u32 %v67, %v71
    %v76 = vmul.u32 %v72, 3266489909
    %v77 = vmul.u32 %v73, 3266489909
    %v78 = vmul.u32 %v74, 3266489909
    %v79 = vmul.u32 %v75, 3266489909
    %v80 = vshrl.u32 %v76, 16
    %v81 = vshrl.u32 %v77, 16
    %v82 = vshrl.u32 %v78, 16
    %v83 = vshrl.u32 %v79, 16
    %v84 = vxor.u32 %v76, %v80
    %v85 = vxor.u32 %v77, %v81
    %v86 = vxor.u32 %v78, %v82
    %v87 = vxor.u32 %v79, %v83
    %vm88 = vcmp.ge.u32.totalorder %v84, 429496730
    %vm89 = vcmp.ge.u32.totalorder %v85, 429496730
    %vm90 = vcmp.ge.u32.totalorder %v86, 429496730
    %vm91 = vcmp.ge.u32.totalorder %v87, 429496730
    %v92 = vld [vmem:[#allocation4] sm:$0xff]
    %v93 = vld [vmem:[#allocation4 + $0x8] sm:$0xff]
    %v94 = vld [vmem:[#allocation4 + $0x10] sm:$0xff]
    %v95 = vld [vmem:[#allocation4 + $0x18] sm:$0xff]
    %v96 = vmul.f32 %v92, 1.1111112
    %v97 = vmul.f32 %v93, 1.1111112
    %v98 = vmul.f32 %v94, 1.1111112
    %v99 = vmul.f32 %v95, 1.1111112
    %v100 = vsel %vm88, %v96, 0.0
    %v101 = vsel %vm89, %v97, 0.0
    %v102 = vsel %vm90, %v98, 0.0
    %v103 = vsel %vm91, %v99, 0.0
    %vm104 = vcmask 261120
    %105 = vst.msk [vmem:[#allocation7] sm:$0xff] %vm104, %v100
    %106 = vst.msk [vmem:[#allocation7 + $0x8] sm:$0xff] %vm104, %v101
    %107 = vst.msk [vmem:[#allocation7 + $0x10] sm:$0xff] %vm104, %v102
    %108 = vst.msk [vmem:[#allocation7 + $0x18] sm:$0xff] %vm104, %v103
    // Predicated region
    $region10: #{tpu_custom_call.1} parent=1 // pred_check
      _
    $region11: #{tpu_custom_call.1} parent=1 // pred_check_branch
      %110 = sbr.rel (0) target = $region13
    $region12: #{tpu_custom_call.1} parent=1 // pred_region
      %s112 = ssub.s32 512, 512
      %113 = vsyncadd [#allocation6], %s112
      %s114 = sshll.u32 [#allocation7], 4
      %s115 = int_to_ptr.vmem [resolvable:$true] %s114
      %120 = dma.vmem_to_hbm [thread:$0]  %s115, 512, %s2, [#allocation6], 128, 128, 8
    $region13: #{tpu_custom_call.1} parent=1 // pred_fallthru
      _
    // Predicated region
    $region14: #{tpu_custom_call.1} parent=1 // pred_check
      _
    $region15: #{tpu_custom_call.1} parent=1 // pred_check_branch
      %122 = sbr.rel (0) target = $region17
    $region16: #{tpu_custom_call.1} parent=1 // pred_region
      %123 = dma.done [#allocation6], 512
    $region17: #{tpu_custom_call.1} parent=1 // pred_fallthru
      _
    %124 = vsyncpa [#allocation5], 1
    %125 = vsyncpa [#allocation6], 1

</llo_original>
